<compile_context>
chip_gen: v5e
topology: v5e:2x2
jax: 0.10.0
libtpu: 0.0.40
codegen_flags: <defaults>
</compile_context>

<pallas_src>
import jax
import jax.numpy as jnp
from jax import lax
from jax.experimental import pallas as pl
from jax.experimental.pallas import tpu as pltpu


def _round_up(x, m):
    return (x + m - 1) // m * m


def _mtl_kernel(x_ref, w1_ref, b1_ref, w2_ref, b2_ref, wt_ref, bt_ref, o_ref):
    # x_ref: (TILE_B, IN) f32, natural layout.  Activations below are
    # (features, batch) so the batch tile is the lane axis everywhere.

    # Shared layer 1: Linear(IN, 128) + ReLU, f32 (K is tiny).
    # Contract the lane (feature) axis of both operands: W1 @ x_blk^T.
    h1 = lax.dot_general(
        w1_ref[...], x_ref[...],
        dimension_numbers=(((1,), (1,)), ((), ())),
        preferred_element_type=jnp.float32)                     # (128, TILE_B)
    h1 = jnp.maximum(h1 + b1_ref[...], 0.0)

    # Shared layer 2: Linear(128, 64) + ReLU.  bf16 MXU operands, f32 acc.
    h2 = jnp.dot(w2_ref[...], h1.astype(jnp.bfloat16),
                 preferred_element_type=jnp.float32)            # (64, TILE_B)
    h2 = jnp.maximum(h2 + b2_ref[...], 0.0)

    # Four task heads fused (padded to 8 rows -> full sublanes): Linear(64,1)x4 + ReLU.
    out = jnp.dot(wt_ref[...], h2.astype(jnp.bfloat16),
                  preferred_element_type=jnp.float32)           # (8, TILE_B)
    out = jnp.maximum(out + bt_ref[...], 0.0)

    # Lane-dense store: last dim is the batch tile (multiple of 128).
    o_ref[...] = out.astype(o_ref.dtype)


def shared_mtl_forward(x, params, *, tile_b=2048):
    """x: (B, input_size) float32.  params in PyTorch nn.Linear layout.

    Returns a tuple of four (B, 1) float32 arrays (task1..task4)."""
    w1, b1, w2, b2, wt, bt = params          # w*: (out, in), b*: (out,)
    B, in_features = x.shape
    h1_dim = w1.shape[0]
    h2_dim = w2.shape[0]
    n_tasks = wt.shape[0]
    n_tasks_pad = _round_up(max(n_tasks, 8), 8)    # full sublanes for the output slab

    # Batch tiling: tile is a multiple of 128 (lane axis of the output).
    b128 = _round_up(B, 128)
    tile_b = max(128, min(_round_up(tile_b, 128), b128))
    # v7x megacore: guarantee >= 2 grid steps whenever the batch allows it so
    # the "parallel" axis shards across both TensorCores (harmless on v5e/v6e).
    if b128 >= 2 * 128:
        tile_b = min(tile_b, _round_up((b128 + 1) // 2, 128))
    b_pad = _round_up(B, tile_b)
    grid = (b_pad // tile_b,)

    # Input stays in its natural (B, F) f32 layout; only pad batch rows if needed.
    x_p = x.astype(jnp.float32)
    if b_pad != B:
        x_p = jnp.pad(x_p, ((0, b_pad - B), (0, 0)))

    # Parameter prep (tiny; weights/biases are VMEM-resident via constant index maps).
    w1_c = w1.astype(jnp.float32)                              # (128, IN) f32
    b1_c = b1.astype(jnp.float32).reshape(h1_dim, 1)
    w2_c = w2.astype(jnp.bfloat16)                             # (64, 128) bf16
    b2_c = b2.astype(jnp.float32).reshape(h2_dim, 1)
    wt_c = jnp.zeros((n_tasks_pad, h2_dim), jnp.bfloat16)
    wt_c = wt_c.at[:n_tasks].set(wt.astype(jnp.bfloat16))      # (8, 64) bf16
    bt_c = jnp.zeros((n_tasks_pad, 1), jnp.float32)
    bt_c = bt_c.at[:n_tasks, 0].set(bt.astype(jnp.float32))

    flops = 2 * b_pad * (in_features * h1_dim + h1_dim * h2_dim + h2_dim * n_tasks_pad)
    bytes_accessed = (
        b_pad * in_features * 4                                   # x (f32)
        + (h1_dim * in_features + h1_dim) * 4                     # layer-1 params
        + (h2_dim * h1_dim + n_tasks_pad * h2_dim) * 2            # bf16 weights
        + (h2_dim + n_tasks_pad) * 4                              # f32 biases
        + n_tasks_pad * b_pad * 4                                 # output
    )

    out_t = pl.pallas_call(
        _mtl_kernel,
        out_shape=jax.ShapeDtypeStruct((n_tasks_pad, b_pad), jnp.float32),
        grid=grid,
        in_specs=[
            # x: tiled over batch, natural layout (last dim == full array dim).
            pl.BlockSpec((tile_b, in_features), lambda i: (i, 0)),
            # Weights / biases: constant index_map -> DMA'd once, VMEM-resident.
            pl.BlockSpec((h1_dim, in_features), lambda i: (0, 0)),
            pl.BlockSpec((h1_dim, 1), lambda i: (0, 0)),
            pl.BlockSpec((h2_dim, h1_dim), lambda i: (0, 0)),
            pl.BlockSpec((h2_dim, 1), lambda i: (0, 0)),
            pl.BlockSpec((n_tasks_pad, h2_dim), lambda i: (0, 0)),
            pl.BlockSpec((n_tasks_pad, 1), lambda i: (0, 0)),
        ],
        out_specs=pl.BlockSpec((n_tasks_pad, tile_b), lambda i: (0, i)),
        compiler_params=pltpu.CompilerParams(
            dimension_semantics=("parallel",),
            vmem_limit_bytes=32 * 1024 * 1024,
        ),
        cost_estimate=pl.CostEstimate(
            flops=flops, transcendentals=0, bytes_accessed=bytes_accessed),
    )(x_p, w1_c, b1_c, w2_c, b2_c, wt_c, bt_c)

    out = out_t[:n_tasks, :B]                  # (n_tasks, B); row slices are contiguous
    return tuple(out[i][:, None] for i in range(n_tasks))


def init_params(key, input_size=5, hidden_size1=128, hidden_size2=64, num_tasks=4):
    """Deterministic init mirroring PyTorch nn.Linear shapes: (out, in) + (out,)."""
    ks = jax.random.split(key, 6)

    def uinit(k, shape, fan_in):
        bound = float(fan_in) ** -0.5
        return jax.random.uniform(k, shape, jnp.float32, -bound, bound)

    w1 = uinit(ks[0], (hidden_size1, input_size), input_size)
    b1 = uinit(ks[1], (hidden_size1,), input_size)
    w2 = uinit(ks[2], (hidden_size2, hidden_size1), hidden_size1)
    b2 = uinit(ks[3], (hidden_size2,), hidden_size1)
    # Four Linear(hidden_size2, 1) heads fused row-wise into one (4, 64) matrix.
    wt = uinit(ks[4], (num_tasks, hidden_size2), hidden_size2)
    bt = uinit(ks[5], (num_tasks,), hidden_size2)
    return (w1, b1, w2, b2, wt, bt)


def reference_forward(x, params, *, bf16_matmuls=True):
    """Pure-JAX reference (standard (B, features) layout).

    With bf16_matmuls=True, layers 2/3 use bf16 operands (matching the kernel);
    layer 1 is always f32 (matching the kernel)."""
    w1, b1, w2, b2, wt, bt = params
    cast = (lambda a: a.astype(jnp.bfloat16)) if bf16_matmuls else (lambda a: a)
    h1 = jnp.maximum(
        jnp.dot(x, w1.T, preferred_element_type=jnp.float32) + b1[None, :], 0.0)
    h2 = jnp.maximum(
        jnp.dot(cast(h1), cast(w2.T), preferred_element_type=jnp.float32)
        + b2[None, :], 0.0)
    out = jnp.maximum(
        jnp.dot(cast(h2), cast(wt.T), preferred_element_type=jnp.float32)
        + bt[None, :], 0.0)
    return tuple(out[:, i:i + 1] for i in range(wt.shape[0]))


if __name__ == "__main__":
    key = jax.random.PRNGKey(0)
    kx, kp = jax.random.split(key)

    B, INPUT = 8, 5
    x = jax.random.normal(kx, (B, INPUT), dtype=jnp.float32)
    params = init_params(kp, input_size=INPUT)

    fwd = jax.jit(shared_mtl_forward)
    outs = jax.block_until_ready(fwd(x, params))

    refs_mixed = reference_forward(x, params, bf16_matmuls=True)
    refs_f32 = reference_forward(x, params, bf16_matmuls=False)
    for o, rm, rf in zip(outs, refs_mixed, refs_f32):
        assert o.shape == (B, 1)
        # Check against a precision-matched reference (layer1 f32, layers 2/3 bf16).
        assert jnp.allclose(o, rm, atol=1e-2, rtol=1e-2)
        # Loose sanity check against the pure-f32 reference semantics.
        assert jnp.allclose(o, rf, atol=5e-2, rtol=5e-2)

    print("KERNEL_OK")
</pallas_src>

<mosaic_0001>
module attributes {stable_mosaic.version = 11 : i64} {
  func.func @_mtl_kernel(%arg0: i32, %arg1: memref<128x5xf32, #tpu.memory_space<vmem>>, %arg2: memref<128x5xf32, #tpu.memory_space<vmem>>, %arg3: memref<128x1xf32, #tpu.memory_space<vmem>>, %arg4: memref<64x128xbf16, #tpu.memory_space<vmem>>, %arg5: memref<64x1xf32, #tpu.memory_space<vmem>>, %arg6: memref<8x64xbf16, #tpu.memory_space<vmem>>, %arg7: memref<8x1xf32, #tpu.memory_space<vmem>>, %arg8: memref<8x128xf32, #tpu.memory_space<vmem>>) attributes {dimension_semantics = [#tpu.dimension_semantics<parallel>], iteration_bounds = array<i64: 1>, scalar_prefetch = 0 : i64, scratch_operands = 0 : i64, tpu.core_type = #tpu.core_type<tc>, window_params = [{transform_indices = @transform_0, window_bounds = array<i64: 128, 5>}, {pipeline_mode = #tpu.pipeline_mode<synchronous>, transform_indices = @transform_1, window_bounds = array<i64: 128, 5>}, {pipeline_mode = #tpu.pipeline_mode<synchronous>, transform_indices = @transform_2, window_bounds = array<i64: 128, 1>}, {pipeline_mode = #tpu.pipeline_mode<synchronous>, transform_indices = @transform_3, window_bounds = array<i64: 64, 128>}, {pipeline_mode = #tpu.pipeline_mode<synchronous>, transform_indices = @transform_4, window_bounds = array<i64: 64, 1>}, {pipeline_mode = #tpu.pipeline_mode<synchronous>, transform_indices = @transform_5, window_bounds = array<i64: 8, 64>}, {pipeline_mode = #tpu.pipeline_mode<synchronous>, transform_indices = @transform_6, window_bounds = array<i64: 8, 1>}, {transform_indices = @transform_7, window_bounds = array<i64: 8, 128>}]} {
    %c0 = arith.constant 0 : index
    %c0_0 = arith.constant 0 : index
    %0 = vector.load %arg2[%c0, %c0_0] : memref<128x5xf32, #tpu.memory_space<vmem>>, vector<128x5xf32>
    %c0_1 = arith.constant 0 : index
    %c0_2 = arith.constant 0 : index
    %1 = vector.load %arg1[%c0_1, %c0_2] : memref<128x5xf32, #tpu.memory_space<vmem>>, vector<128x5xf32>
    %cst = arith.constant dense<0.000000e+00> : vector<128x128xf32>
    %2 = tpu.matmul %0, %1, %cst {dimension_numbers = #tpu.dot_dimension_numbers<[1], [1], [0], [0], [0, 0, 1, 0], [], []>} : vector<128x5xf32>, vector<128x5xf32>, vector<128x128xf32> -> vector<128x128xf32>
    %c0_3 = arith.constant 0 : index
    %c0_4 = arith.constant 0 : index
    %3 = vector.load %arg3[%c0_3, %c0_4] : memref<128x1xf32, #tpu.memory_space<vmem>>, vector<128x1xf32>
    %4 = vector.broadcast %3 : vector<128x1xf32> to vector<128x128xf32>
    %5 = arith.addf %2, %4 : vector<128x128xf32>
    %cst_5 = arith.constant 0.000000e+00 : f32
    %6 = vector.broadcast %cst_5 : f32 to vector<128x128xf32>
    %7 = arith.maximumf %5, %6 : vector<128x128xf32>
    %c0_6 = arith.constant 0 : index
    %c0_7 = arith.constant 0 : index
    %8 = vector.load %arg4[%c0_6, %c0_7] : memref<64x128xbf16, #tpu.memory_space<vmem>>, vector<64x128xbf16>
    %9 = arith.truncf %7 : vector<128x128xf32> to vector<128x128xbf16>
    %cst_8 = arith.constant dense<0.000000e+00> : vector<64x128xf32>
    %10 = tpu.matmul %8, %9, %cst_8 {dimension_numbers = #tpu.dot_dimension_numbers<[1], [0], [0], [1], [0, 0, 1, 1], [], []>} : vector<64x128xbf16>, vector<128x128xbf16>, vector<64x128xf32> -> vector<64x128xf32>
    %c0_9 = arith.constant 0 : index
    %c0_10 = arith.constant 0 : index
    %11 = vector.load %arg5[%c0_9, %c0_10] : memref<64x1xf32, #tpu.memory_space<vmem>>, vector<64x1xf32>
    %12 = vector.broadcast %11 : vector<64x1xf32> to vector<64x128xf32>
    %13 = arith.addf %10, %12 : vector<64x128xf32>
    %cst_11 = arith.constant 0.000000e+00 : f32
    %14 = vector.broadcast %cst_11 : f32 to vector<64x128xf32>
    %15 = arith.maximumf %13, %14 : vector<64x128xf32>
    %c0_12 = arith.constant 0 : index
    %c0_13 = arith.constant 0 : index
    %16 = vector.load %arg6[%c0_12, %c0_13] : memref<8x64xbf16, #tpu.memory_space<vmem>>, vector<8x64xbf16>
    %17 = arith.truncf %15 : vector<64x128xf32> to vector<64x128xbf16>
    %cst_14 = arith.constant dense<0.000000e+00> : vector<8x128xf32>
    %18 = tpu.matmul %16, %17, %cst_14 {dimension_numbers = #tpu.dot_dimension_numbers<[1], [0], [0], [1], [0, 0, 1, 1], [], []>} : vector<8x64xbf16>, vector<64x128xbf16>, vector<8x128xf32> -> vector<8x128xf32>
    %c0_15 = arith.constant 0 : index
    %c0_16 = arith.constant 0 : index
    %19 = vector.load %arg7[%c0_15, %c0_16] : memref<8x1xf32, #tpu.memory_space<vmem>>, vector<8x1xf32>
    %20 = vector.broadcast %19 : vector<8x1xf32> to vector<8x128xf32>
    %21 = arith.addf %18, %20 : vector<8x128xf32>
    %cst_17 = arith.constant 0.000000e+00 : f32
    %22 = vector.broadcast %cst_17 : f32 to vector<8x128xf32>
    %23 = arith.maximumf %21, %22 : vector<8x128xf32>
    %c0_18 = arith.constant 0 : index
    %c0_19 = arith.constant 0 : index
    %24 = vector.load %arg8[%c0_18, %c0_19] : memref<8x128xf32, #tpu.memory_space<vmem>>, vector<8x128xf32>
    tpu.vector_store %arg8[%c0_18, %c0_19], %23 {strides = array<i32>} : memref<8x128xf32, #tpu.memory_space<vmem>>, vector<8x128xf32>,
    return
  }
  func.func @transform_0(%arg0: i32) -> (i32, i32) {
    %c0_i32 = arith.constant 0 : i32
    %c0_i32_0 = arith.constant 0 : i32
    return %arg0, %c0_i32 : i32, i32
  }
  func.func @transform_1(%arg0: i32) -> (i32, i32) {
    %c0_i32 = arith.constant 0 : i32
    %c0_i32_0 = arith.constant 0 : i32
    %c0_i32_1 = arith.constant 0 : i32
    return %c0_i32, %c0_i32_0 : i32, i32
  }
  func.func @transform_2(%arg0: i32) -> (i32, i32) {
    %c0_i32 = arith.constant 0 : i32
    %c0_i32_0 = arith.constant 0 : i32
    %c0_i32_1 = arith.constant 0 : i32
    return %c0_i32, %c0_i32_0 : i32, i32
  }
  func.func @transform_3(%arg0: i32) -> (i32, i32) {
    %c0_i32 = arith.constant 0 : i32
    %c0_i32_0 = arith.constant 0 : i32
    %c0_i32_1 = arith.constant 0 : i32
    return %c0_i32, %c0_i32_0 : i32, i32
  }
  func.func @transform_4(%arg0: i32) -> (i32, i32) {
    %c0_i32 = arith.constant 0 : i32
    %c0_i32_0 = arith.constant 0 : i32
    %c0_i32_1 = arith.constant 0 : i32
    return %c0_i32, %c0_i32_0 : i32, i32
  }
  func.func @transform_5(%arg0: i32) -> (i32, i32) {
    %c0_i32 = arith.constant 0 : i32
    %c0_i32_0 = arith.constant 0 : i32
    %c0_i32_1 = arith.constant 0 : i32
    return %c0_i32, %c0_i32_0 : i32, i32
  }
  func.func @transform_6(%arg0: i32) -> (i32, i32) {
    %c0_i32 = arith.constant 0 : i32
    %c0_i32_0 = arith.constant 0 : i32
    %c0_i32_1 = arith.constant 0 : i32
    return %c0_i32, %c0_i32_0 : i32, i32
  }
  func.func @transform_7(%arg0: i32) -> (i32, i32) {
    %c0_i32 = arith.constant 0 : i32
    %c0_i32_0 = arith.constant 0 : i32
    return %c0_i32, %arg0 : i32, i32
  }
}

</mosaic_0001>

<llo_original>
// kernel: shared_mtl_forward.1
$region0: #{shared_mtl_forward.1}
  #allocation0 [shape = 'u32[]', space=smem, size = 0x4, offset = 0x4, fixed_abs, tag = 'smem constant byte address 0x4 - core index']
  #allocation1 [shape = 'u32[72,128]{1,0:T(1,128)}', space=vmem, size = 0x9000, scoped, tag = 'internal scratch']
  %s0 = inlined_call_operand.vmem [shape: f32[128,5], index: 0, kind: input, shape index: {}]
  %s1 = inlined_call_operand.vmem [shape: f32[128,5], index: 1, kind: input, shape index: {}]
  %s2 = inlined_call_operand.vmem [shape: f32[128,1], index: 2, kind: input, shape index: {}]
  %s3 = inlined_call_operand.vmem [shape: bf16[64,128], index: 3, kind: input, shape index: {}]
  %s4 = inlined_call_operand.vmem [shape: f32[64,1], index: 4, kind: input, shape index: {}]
  %s5 = inlined_call_operand.vmem [shape: bf16[8,64], index: 5, kind: input, shape index: {}]
  %s6 = inlined_call_operand.vmem [shape: f32[8,1], index: 6, kind: input, shape index: {}]
  %s7 = inlined_call_operand.vmem [shape: f32[8,128], index: 7, kind: output, shape index: {}]
  %s8 = sld [smem:[#allocation0]]
  $region38: #{shared_mtl_forward.1} parent=0
    _
  %s10 = ssub.s32 1, %s8
  %s11 = scalar_select 0, %s10, %s8
  // Predicated region
  $region2: #{shared_mtl_forward.1} parent=0 // pred_check
    _
  $region3: #{shared_mtl_forward.1} parent=0 // pred_check_branch
    %13 = sbr.rel (0) target = $region5
  $region4: #{shared_mtl_forward.1} parent=0 // pred_region
    _
  $region5: #{shared_mtl_forward.1} parent=0 // pred_fallthru
    _
  // Predicated region
  $region6: #{shared_mtl_forward.1} parent=0 // pred_check
    _
  $region7: #{shared_mtl_forward.1} parent=0 // pred_check_branch
    %15 = sbr.rel (0) target = $region9
  $region8: #{shared_mtl_forward.1} parent=0 // pred_region
    _
  $region9: #{shared_mtl_forward.1} parent=0 // pred_fallthru
    _
  // Predicated region
  $region10: #{shared_mtl_forward.1} parent=0 // pred_check
    _
  $region11: #{shared_mtl_forward.1} parent=0 // pred_check_branch
    %17 = sbr.rel (0) target = $region13
  $region12: #{shared_mtl_forward.1} parent=0 // pred_region
    _
  $region13: #{shared_mtl_forward.1} parent=0 // pred_fallthru
    _
  // Predicated region
  $region14: #{shared_mtl_forward.1} parent=0 // pred_check
    _
  $region15: #{shared_mtl_forward.1} parent=0 // pred_check_branch
    %19 = sbr.rel (0) target = $region17
  $region16: #{shared_mtl_forward.1} parent=0 // pred_region
    _
  $region17: #{shared_mtl_forward.1} parent=0 // pred_fallthru
    _
  // Predicated region
  $region18: #{shared_mtl_forward.1} parent=0 // pred_check
    _
  $region19: #{shared_mtl_forward.1} parent=0 // pred_check_branch
    %21 = sbr.rel (0) target = $region21
  $region20: #{shared_mtl_forward.1} parent=0 // pred_region
    _
  $region21: #{shared_mtl_forward.1} parent=0 // pred_fallthru
    _
  // Predicated region
  $region22: #{shared_mtl_forward.1} parent=0 // pred_check
    _
  $region23: #{shared_mtl_forward.1} parent=0 // pred_check_branch
    %23 = sbr.rel (0) target = $region25
  $region24: #{shared_mtl_forward.1} parent=0 // pred_region
    _
  $region25: #{shared_mtl_forward.1} parent=0 // pred_fallthru
    _
  // Predicated region
  $region26: #{shared_mtl_forward.1} parent=0 // pred_check
    _
  $region27: #{shared_mtl_forward.1} parent=0 // pred_check_branch
    %25 = sbr.rel (0) target = $region29
  $region28: #{shared_mtl_forward.1} parent=0 // pred_region
    _
  $region29: #{shared_mtl_forward.1} parent=0 // pred_fallthru
    _
  %v27 = vld [vmem:[%s1] sm:$0xff]
  %v28 = vld [vmem:[%s1 + $0x8] sm:$0xff]
  %v29 = vld [vmem:[%s1 + $0x10] sm:$0xff]
  %v30 = vld [vmem:[%s1 + $0x18] sm:$0xff]
  %v31 = vld [vmem:[%s1 + $0x20] sm:$0xff]
  %v32 = vld [vmem:[%s1 + $0x28] sm:$0xff]
  %v33 = vld [vmem:[%s1 + $0x30] sm:$0xff]
  %v34 = vld [vmem:[%s1 + $0x38] sm:$0xff]
  %v35 = vld [vmem:[%s1 + $0x40] sm:$0xff]
  %v36 = vld [vmem:[%s1 + $0x48] sm:$0xff]
  %v37 = vld [vmem:[%s1 + $0x50] sm:$0xff]
  %v38 = vld [vmem:[%s1 + $0x58] sm:$0xff]
  %v39 = vld [vmem:[%s1 + $0x60] sm:$0xff]
  %v40 = vld [vmem:[%s1 + $0x68] sm:$0xff]
  %v41 = vld [vmem:[%s1 + $0x70] sm:$0xff]
  %v42 = vld [vmem:[%s1 + $0x78] sm:$0xff]
  %v43 = vld [vmem:[%s0] sm:$0xff]
  %v44 = vld [vmem:[%s0 + $0x8] sm:$0xff]
  %v45 = vld [vmem:[%s0 + $0x10] sm:$0xff]
  %v46 = vld [vmem:[%s0 + $0x18] sm:$0xff]
  %v47 = vld [vmem:[%s0 + $0x20] sm:$0xff]
  %v48 = vld [vmem:[%s0 + $0x28] sm:$0xff]
  %v49 = vld [vmem:[%s0 + $0x30] sm:$0xff]
  %v50 = vld [vmem:[%s0 + $0x38] sm:$0xff]
  %v51 = vld [vmem:[%s0 + $0x40] sm:$0xff]
  %v52 = vld [vmem:[%s0 + $0x48] sm:$0xff]
  %v53 = vld [vmem:[%s0 + $0x50] sm:$0xff]
  %v54 = vld [vmem:[%s0 + $0x58] sm:$0xff]
  %v55 = vld [vmem:[%s0 + $0x60] sm:$0xff]
  %v56 = vld [vmem:[%s0 + $0x68] sm:$0xff]
  %v57 = vld [vmem:[%s0 + $0x70] sm:$0xff]
  %v58 = vld [vmem:[%s0 + $0x78] sm:$0xff]
  %v59 = vld [vmem:[%s2] sm:$0xff]
  %v60 = vld [vmem:[%s2 + $0x8] sm:$0xff]
  %v61 = vld [vmem:[%s2 + $0x10] sm:$0xff]
  %v62 = vld [vmem:[%s2 + $0x18] sm:$0xff]
  %v63 = vld [vmem:[%s2 + $0x20] sm:$0xff]
  %v64 = vld [vmem:[%s2 + $0x28] sm:$0xff]
  %v65 = vld [vmem:[%s2 + $0x30] sm:$0xff]
  %v66 = vld [vmem:[%s2 + $0x38] sm:$0xff]
  %v67 = vld [vmem:[%s2 + $0x40] sm:$0xff]
  %v68 = vld [vmem:[%s2 + $0x48] sm:$0xff]
  %v69 = vld [vmem:[%s2 + $0x50] sm:$0xff]
  %v70 = vld [vmem:[%s2 + $0x58] sm:$0xff]
  %v71 = vld [vmem:[%s2 + $0x60] sm:$0xff]
  %v72 = vld [vmem:[%s2 + $0x68] sm:$0xff]
  %v73 = vld [vmem:[%s2 + $0x70] sm:$0xff]
  %v74 = vld [vmem:[%s2 + $0x78] sm:$0xff]
  %76 = vset.pattern.permute.xlu0 0
  %77 = vperm.xlu0 %76, %v59
  %v78 = vpop.permute.xlu0 %77
  %81 = vset.pattern.permute.xlu0 0
  %82 = vperm.xlu0 %81, %v60
  %v83 = vpop.permute.xlu0 %82
  %86 = vset.pattern.permute.xlu0 0
  %87 = vperm.xlu0 %86, %v61
  %v88 = vpop.permute.xlu0 %87
  %91 = vset.pattern.permute.xlu0 0
  %92 = vperm.xlu0 %91, %v62
  %v93 = vpop.permute.xlu0 %92
  %96 = vset.pattern.permute.xlu0 0
  %97 = vperm.xlu0 %96, %v63
  %v98 = vpop.permute.xlu0 %97
  %101 = vset.pattern.permute.xlu0 0
  %102 = vperm.xlu0 %101, %v64
  %v103 = vpop.permute.xlu0 %102
  %106 = vset.pattern.permute.xlu0 0
  %107 = vperm.xlu0 %106, %v65
  %v108 = vpop.permute.xlu0 %107
  %111 = vset.pattern.permute.xlu0 0
  %112 = vperm.xlu0 %111, %v66
  %v113 = vpop.permute.xlu0 %112
  %116 = vset.pattern.permute.xlu0 0
  %117 = vperm.xlu0 %116, %v67
  %v118 = vpop.permute.xlu0 %117
  %121 = vset.pattern.permute.xlu0 0
  %122 = vperm.xlu0 %121, %v68
  %v123 = vpop.permute.xlu0 %122
  %126 = vset.pattern.permute.xlu0 0
  %127 = vperm.xlu0 %126, %v69
  %v128 = vpop.permute.xlu0 %127
  %131 = vset.pattern.permute.xlu0 0
  %132 = vperm.xlu0 %131, %v70
  %v133 = vpop.permute.xlu0 %132
  %136 = vset.pattern.permute.xlu0 0
  %137 = vperm.xlu0 %136, %v71
  %v138 = vpop.permute.xlu0 %137
  %141 = vset.pattern.permute.xlu0 0
  %142 = vperm.xlu0 %141, %v72
  %v143 = vpop.permute.xlu0 %142
  %146 = vset.pattern.permute.xlu0 0
  %147 = vperm.xlu0 %146, %v73
  %v148 = vpop.permute.xlu0 %147
  %151 = vset.pattern.permute.xlu0 0
  %152 = vperm.xlu0 %151, %v74
  %v153 = vpop.permute.xlu0 %152
  %vm155 = vcmask 39936
  %v157 = vsel %vm155, %v27, 0
  %v160 = vsel %vm155, %v28, 0
  %v163 = vsel %vm155, %v29, 0
  %v166 = vsel %vm155, %v30, 0
  %v169 = vsel %vm155, %v31, 0
  %v172 = vsel %vm155, %v32, 0
  %v175 = vsel %vm155, %v33, 0
  %v178 = vsel %vm155, %v34, 0
  %v181 = vsel %vm155, %v35, 0
  %v184 = vsel %vm155, %v36, 0
  %v187 = vsel %vm155, %v37, 0
  %v190 = vsel %vm155, %v38, 0
  %v193 = vsel %vm155, %v39, 0
  %v196 = vsel %vm155, %v40, 0
  %v199 = vsel %vm155, %v41, 0
  %v202 = vsel %vm155, %v42, 0
  %v205 = vsel %vm155, %v43, 0
  %v208 = vsel %vm155, %v44, 0
  %v211 = vsel %vm155, %v45, 0
  %v214 = vsel %vm155, %v46, 0
  %v217 = vsel %vm155, %v47, 0
  %v220 = vsel %vm155, %v48, 0
  %v223 = vsel %vm155, %v49, 0
  %v226 = vsel %vm155, %v50, 0
  %v229 = vsel %vm155, %v51, 0
  %v232 = vsel %vm155, %v52, 0
  %v235 = vsel %vm155, %v53, 0
  %v238 = vsel %vm155, %v54, 0
  %v241 = vsel %vm155, %v55, 0
  %v244 = vsel %vm155, %v56, 0
  %v247 = vsel %vm155, %v57, 0
  %v250 = vsel %vm155, %v58, 0
  %252 = vmatpush.xpose.msra.mxu0 %v250
  %253 = vmatpush.xpose.msra.mxu0 %v247
  %254 = vmatpush.xpose.msra.mxu0 %v244
  %255 = vmatpush.xpose.msra.mxu0 %v241
  %256 = vmatpush.xpose.msra.mxu0 %v238
  %257 = vmatpush.xpose.msra.mxu0 %v235
  %258 = vmatpush.xpose.msra.mxu0 %v232
  %259 = vmatpush.xpose.msra.mxu0 %v229
  %260 = vmatpush.xpose.msra.mxu0 %v226
  %261 = vmatpush.xpose.msra.mxu0 %v223
  %262 = vmatpush.xpose.msra.mxu0 %v220
  %263 = vmatpush.xpose.msra.mxu0 %v217
  %264 = vmatpush.xpose.msra.mxu0 %v214
  %265 = vmatpush.xpose.msra.mxu0 %v211
  %266 = vmatpush.xpose.msra.mxu0 %v208
  %267 = vmatpush.xpose.msra.mxu0 %v205
  %268 = vmatmul.f32.gmra.mxu0 %v157
  %v269 = vpop.f32.mrf.mxu0
  %v270 = vadd.f32 %v78, %v269
  %271 = vmatmul.f32.gmra.mxu0 %v160
  %v272 = vpop.f32.mrf.mxu0
  %v273 = vadd.f32 %v83, %v272
  %274 = vmatmul.f32.gmra.mxu0 %v163
  %v275 = vpop.f32.mrf.mxu0
  %v276 = vadd.f32 %v88, %v275
  %277 = vmatmul.f32.gmra.mxu0 %v166
  %v278 = vpop.f32.mrf.mxu0
  %v279 = vadd.f32 %v93, %v278
  %280 = vmatmul.f32.gmra.mxu0 %v169
  %v281 = vpop.f32.mrf.mxu0
  %v282 = vadd.f32 %v98, %v281
  %283 = vmatmul.f32.gmra.mxu0 %v172
  %v284 = vpop.f32.mrf.mxu0
  %v285 = vadd.f32 %v103, %v284
  %286 = vmatmul.f32.gmra.mxu0 %v175
  %v287 = vpop.f32.mrf.mxu0
  %v288 = vadd.f32 %v108, %v287
  %289 = vmatmul.f32.gmra.mxu0 %v178
  %v290 = vpop.f32.mrf.mxu0
  %v291 = vadd.f32 %v113, %v290
  %292 = vmatmul.f32.gmra.mxu0 %v181
  %v293 = vpop.f32.mrf.mxu0
  %v294 = vadd.f32 %v118, %v293
  %295 = vmatmul.f32.gmra.mxu0 %v184
  %v296 = vpop.f32.mrf.mxu0
  %v297 = vadd.f32 %v123, %v296
  %298 = vmatmul.f32.gmra.mxu0 %v187
  %v299 = vpop.f32.mrf.mxu0
  %v300 = vadd.f32 %v128, %v299
  %301 = vmatmul.f32.gmra.mxu0 %v190
  %v302 = vpop.f32.mrf.mxu0
  %v303 = vadd.f32 %v133, %v302
  %304 = vmatmul.f32.gmra.mxu0 %v193
  %v305 = vpop.f32.mrf.mxu0
  %v306 = vadd.f32 %v138, %v305
  %307 = vmatmul.f32.gmra.mxu0 %v196
  %v308 = vpop.f32.mrf.mxu0
  %v309 = vadd.f32 %v143, %v308
  %310 = vmatmul.f32.gmra.mxu0 %v199
  %v311 = vpop.f32.mrf.mxu0
  %v312 = vadd.f32 %v148, %v311
  %313 = vmatmul.f32.gmra.mxu0 %v202
  %v314 = vpop.f32.mrf.mxu0
  %v315 = vadd.f32 %v153, %v314
  %316 = vdwg.mxu0
  %v317 = vmax.f32 %v270, 0.0
  %v318 = vmax.f32 %v273, 0.0
  %v319 = vmax.f32 %v276, 0.0
  %v320 = vmax.f32 %v279, 0.0
  %v321 = vmax.f32 %v282, 0.0
  %v322 = vmax.f32 %v285, 0.0
  %v323 = vmax.f32 %v288, 0.0
  %v324 = vmax.f32 %v291, 0.0
  %v325 = vmax.f32 %v294, 0.0
  %v326 = vmax.f32 %v297, 0.0
  %v327 = vmax.f32 %v300, 0.0
  %v328 = vmax.f32 %v303, 0.0
  %v329 = vmax.f32 %v306, 0.0
  %v330 = vmax.f32 %v309, 0.0
  %v331 = vmax.f32 %v312, 0.0
  %v332 = vmax.f32 %v315, 0.0
  %v333 = vld [vmem:[%s3] sm:$0xf]
  %v334 = vld [vmem:[%s3 + $0x4] sm:$0xf]
  %v335 = vld [vmem:[%s3 + $0x8] sm:$0xf]
  %v336 = vld [vmem:[%s3 + $0xc] sm:$0xf]
  %v337 = vld [vmem:[%s3 + $0x10] sm:$0xf]
  %v338 = vld [vmem:[%s3 + $0x14] sm:$0xf]
  %v339 = vld [vmem:[%s3 + $0x18] sm:$0xf]
  %v340 = vld [vmem:[%s3 + $0x1c] sm:$0xf]
  %v341 = vpack.c.bf16 %v318, %v317
  %v342 = vpack.c.bf16 %v320, %v319
  %v343 = vpack.c.bf16 %v322, %v321
  %v344 = vpack.c.bf16 %v324, %v323
  %v345 = vpack.c.bf16 %v326, %v325
  %v346 = vpack.c.bf16 %v328, %v327
  %v347 = vpack.c.bf16 %v330, %v329
  %v348 = vpack.c.bf16 %v332, %v331
  %v349 = vld [vmem:[%s4] sm:$0xff]
  %v350 = vld [vmem:[%s4 + $0x8] sm:$0xff]
  %v351 = vld [vmem:[%s4 + $0x10] sm:$0xff]
  %v352 = vld [vmem:[%s4 + $0x18] sm:$0xff]
  %v353 = vld [vmem:[%s4 + $0x20] sm:$0xff]
  %v354 = vld [vmem:[%s4 + $0x28] sm:$0xff]
  %v355 = vld [vmem:[%s4 + $0x30] sm:$0xff]
  %v356 = vld [vmem:[%s4 + $0x38] sm:$0xff]
  %358 = vset.pattern.permute.xlu0 0
  %359 = vperm.xlu0 %358, %v349
  %v360 = vpop.permute.xlu0 %359
  %363 = vset.pattern.permute.xlu0 0
  %364 = vperm.xlu0 %363, %v350
  %v365 = vpop.permute.xlu0 %364
  %368 = vset.pattern.permute.xlu0 0
  %369 = vperm.xlu0 %368, %v351
  %v370 = vpop.permute.xlu0 %369
  %373 = vset.pattern.permute.xlu0 0
  %374 = vperm.xlu0 %373, %v352
  %v375 = vpop.permute.xlu0 %374
  %378 = vset.pattern.permute.xlu0 0
  %379 = vperm.xlu0 %378, %v353
  %v380 = vpop.permute.xlu0 %379
  %383 = vset.pattern.permute.xlu0 0
  %384 = vperm.xlu0 %383, %v354
  %v385 = vpop.permute.xlu0 %384
  %388 = vset.pattern.permute.xlu0 0
  %389 = vperm.xlu0 %388, %v355
  %v390 = vpop.permute.xlu0 %389
  %393 = vset.pattern.permute.xlu0 0
  %394 = vperm.xlu0 %393, %v356
  %v395 = vpop.permute.xlu0 %394
  %v405 = vunpack.c.l.b16 %v333
  %v406 = vunpack.c.l.b16 %v334
  %v407 = vunpack.c.l.b16 %v335
  %v408 = vunpack.c.l.b16 %v336
  %v409 = vunpack.c.l.b16 %v337
  %v410 = vunpack.c.l.b16 %v338
  %v411 = vunpack.c.l.b16 %v339
  %v412 = vunpack.c.l.b16 %v340
  %v413 = vpack.c.b16 %v406, %v405
  %v414 = vpack.c.b16 %v408, %v407
  %v415 = vpack.c.b16 %v410, %v409
  %v416 = vpack.c.b16 %v412, %v411
  %421 = vmatpush.bf16.msra.mxu0 %v348
  %422 = vmatpush.bf16.msra.mxu0 %v347
  %423 = vmatpush.bf16.msra.mxu0 %v346
  %424 = vmatpush.bf16.msra.mxu0 %v345
  %425 = vmatpush.bf16.msra.mxu0 %v344
  %426 = vmatpush.bf16.msra.mxu0 %v343
  %427 = vmatpush.bf16.msra.mxu0 %v342
  %428 = vmatpush.bf16.msra.mxu0 %v341
  %429 = vmatmul.bf16.gmra.mxu0 %v413
  %v430 = vpop.f32.mrf.mxu0
  %v431 = vadd.f32 %v360, %v430
  %v432 = vpop.f32.mrf.mxu0
  %v433 = vadd.f32 %v365, %v432
  %434 = vmatmul.bf16.gmra.mxu0 %v414
  %v435 = vpop.f32.mrf.mxu0
  %v436 = vadd.f32 %v370, %v435
  %v437 = vpop.f32.mrf.mxu0
  %v438 = vadd.f32 %v375, %v437
  %439 = vmatmul.bf16.gmra.mxu0 %v415
  %v440 = vpop.f32.mrf.mxu0
  %v441 = vadd.f32 %v380, %v440
  %v442 = vpop.f32.mrf.mxu0
  %v443 = vadd.f32 %v385, %v442
  %444 = vmatmul.bf16.gmra.mxu0 %v416
  %v445 = vpop.f32.mrf.mxu0
  %v446 = vadd.f32 %v390, %v445
  %v447 = vpop.f32.mrf.mxu0
  %v448 = vadd.f32 %v395, %v447
  %449 = vdwg.mxu0
  %v450 = vmax.f32 %v431, 0.0
  %v451 = vmax.f32 %v433, 0.0
  %v452 = vmax.f32 %v436, 0.0
  %v453 = vmax.f32 %v438, 0.0
  %v454 = vmax.f32 %v441, 0.0
  %v455 = vmax.f32 %v443, 0.0
  %v456 = vmax.f32 %v446, 0.0
  %v457 = vmax.f32 %v448, 0.0
  %v458 = vld [vmem:[%s5] sm:$0xf]
  %v459 = vpack.c.bf16 %v451, %v450
  %v460 = vpack.c.bf16 %v453, %v452
  %v461 = vpack.c.bf16 %v455, %v454
  %v462 = vpack.c.bf16 %v457, %v456
  %v463 = vld [vmem:[%s6] sm:$0xff]
  %465 = vset.pattern.permute.xlu0 0
  %466 = vperm.xlu0 %465, %v463
  %v467 = vpop.permute.xlu0 %466
  %vm469 = vcmask 523264
  %v471 = vsel %vm469, %v458, 0
  %473 = vmatpush.bf16.msra.mxu0 0
  %474 = vmatpush.bf16.msra.mxu0 0
  %475 = vmatpush.bf16.msra.mxu0 0
  %476 = vmatpush.bf16.msra.mxu0 0
  %477 = vmatpush.bf16.msra.mxu0 %v462
  %478 = vmatpush.bf16.msra.mxu0 %v461
  %479 = vmatpush.bf16.msra.mxu0 %v460
  %480 = vmatpush.bf16.msra.mxu0 %v459
  %481 = vmatmul.bf16.gmra.mxu0 %v471
  %v482 = vpop.f32.mrf.mxu0
  %v483 = vadd.f32 %v467, %v482
  %v484 = vpop.f32.mrf.mxu0
  %485 = vdwg.mxu0
  %v486 = vmax.f32 %v483, 0.0
  %487 = vst [vmem:[%s7] sm:$0xff] %v486
  // Predicated region
  $region30: #{shared_mtl_forward.1} parent=0 // pred_check
    _
  $region31: #{shared_mtl_forward.1} parent=0 // pred_check_branch
    %489 = sbr.rel (0) target = $region33
  $region32: #{shared_mtl_forward.1} parent=0 // pred_region
    _
  $region33: #{shared_mtl_forward.1} parent=0 // pred_fallthru
    _
  // Predicated region
  $region34: #{shared_mtl_forward.1} parent=0 // pred_check
    _
  $region35: #{shared_mtl_forward.1} parent=0 // pred_check_branch
    %491 = sbr.rel (0) target = $region37
  $region36: #{shared_mtl_forward.1} parent=0 // pred_region
    _
  $region37: #{shared_mtl_forward.1} parent=0 // pred_fallthru
    _

</llo_original>
